<compile_context>
chip_gen: v5e
topology: v5e:2x2
jax: 0.10.0
libtpu: 0.0.40
codegen_flags: <defaults>
</compile_context>

<pallas_src>
import functools

import jax
import jax.numpy as jnp
from jax.experimental import pallas as pl
from jax.experimental.pallas import tpu as pltpu

_BN_EPS = 1e-5
_NUM_PASSES = 3


def _make_kernel(N, C, T, t_tile, num_tt):
    inv_count = 1.0 / float(N * T)
    needs_mask = (T % t_tile) != 0

    def kernel(x_ref, w1_ref, w2_ref, g1_ref, b1_ref, g2_ref, b2_ref,
               o_ref, s1a, s1b, s2a, s2b):
        p = pl.program_id(0)   # pass: 0 = BN1 stats, 1 = BN2 stats, 2 = apply
        n = pl.program_id(1)   # batch index
        t = pl.program_id(2)   # time-tile index
        is_first = jnp.logical_and(n == 0, t == 0)
        is_last = jnp.logical_and(n == N - 1, t == num_tt - 1)

        x = x_ref[...]                                   # (C, t_tile) f32
        if needs_mask:
            lane = jax.lax.broadcasted_iota(jnp.int32, (C, t_tile), 1)
            valid = (t * t_tile + lane) < T
            x = jnp.where(valid, x, 0.0)                 # zero padded lanes
        else:
            valid = None
        xb = x.astype(jnp.bfloat16)                      # bf16 MXU input

        def conv1():
            return jnp.dot(w1_ref[...], xb, preferred_element_type=jnp.float32)

        def bn1_relu(h1):
            # s1a/s1b hold folded BN1 scale/shift after pass 0 finalizes.
            return jnp.maximum(h1 * s1a[...] + s1b[...], 0.0)

        def conv2(h1):
            return jnp.dot(w2_ref[...], h1.astype(jnp.bfloat16),
                           preferred_element_type=jnp.float32)

        def fold(sum_ref, sq_ref, g_ref, b_ref):
            # Convert (sum, sumsq) accumulators into folded (scale, shift).
            mean = sum_ref[...] * inv_count
            var = sq_ref[...] * inv_count - mean * mean   # one-pass variance
            scale = g_ref[...] * jax.lax.rsqrt(var + _BN_EPS)
            sum_ref[...] = scale
            sq_ref[...] = b_ref[...] - mean * scale

        # ---------------- pass 0: BN1 batch statistics ----------------
        @pl.when(p == 0)
        def _():
            @pl.when(is_first)
            def _():
                s1a[...] = jnp.zeros_like(s1a)
                s1b[...] = jnp.zeros_like(s1b)

            h1 = conv1()
            s1a[...] += jnp.sum(h1, axis=1, keepdims=True)
            s1b[...] += jnp.sum(h1 * h1, axis=1, keepdims=True)

            @pl.when(is_last)
            def _():
                fold(s1a, s1b, g1_ref, b1_ref)

        # ---------------- pass 1: BN2 batch statistics ----------------
        @pl.when(p == 1)
        def _():
            @pl.when(is_first)
            def _():
                s2a[...] = jnp.zeros_like(s2a)
                s2b[...] = jnp.zeros_like(s2b)

            h2 = conv2(bn1_relu(conv1()))
            if needs_mask:
                h2 = jnp.where(valid, h2, 0.0)            # exclude pad lanes
            s2a[...] += jnp.sum(h2, axis=1, keepdims=True)
            s2b[...] += jnp.sum(h2 * h2, axis=1, keepdims=True)

            @pl.when(is_last)
            def _():
                fold(s2a, s2b, g2_ref, b2_ref)

        # ------------- pass 2: normalize + residual + write -------------
        @pl.when(p == _NUM_PASSES - 1)
        def _():
            h2 = conv2(bn1_relu(conv1()))
            o_ref[...] = (h2 * s2a[...] + s2b[...] + x).astype(o_ref.dtype)

    return kernel


def _pick_t_tile(C, T, target_bytes=1 << 20):
    """Lane-dense T tile (multiple of 128) with ~1 MiB per f32 (C, t) buffer."""
    lanes = max(((target_bytes // (4 * C)) // 128) * 128, 128)
    return T if lanes >= T else lanes


@functools.partial(jax.jit, static_argnames=("t_tile",))
def resblock_forward(x_nct, w1, w2, g1, b1, g2, b2, *, t_tile=None):
    """x_nct: (N, C, T) float32. Returns (N, C, T) float32."""
    N, C, T = x_nct.shape
    if t_tile is None:
        t_tile = _pick_t_tile(C, T)
    assert t_tile == T or t_tile % 128 == 0, "t_tile must be T or a multiple of 128"
    num_tt = (T + t_tile - 1) // t_tile

    kernel = _make_kernel(N, C, T, t_tile, num_tt)

    # x / out: (C, T_tile) slabs, N dim squeezed.  Weights / BN params use
    # constant index maps -> fetched once and kept VMEM-resident.
    x_spec = pl.BlockSpec((None, C, t_tile), lambda p, n, t: (n, 0, t))
    const2 = lambda p, n, t: (0, 0)
    w_spec = pl.BlockSpec((C, C), const2)
    v_spec = pl.BlockSpec((C, 1), const2)

    def out_index_map(p, n, t):
        # Only the final pass writes; park the output block at (0,0,0) during
        # the statistics passes so no garbage write-backs hit HBM.
        on_apply = p == _NUM_PASSES - 1
        return (jnp.where(on_apply, n, 0), 0, jnp.where(on_apply, t, 0))

    out_spec = pl.BlockSpec((None, C, t_tile), out_index_map)

    return pl.pallas_call(
        kernel,
        grid=(_NUM_PASSES, N, num_tt),
        in_specs=[x_spec, w_spec, w_spec, v_spec, v_spec, v_spec, v_spec],
        out_specs=out_spec,
        out_shape=jax.ShapeDtypeStruct((N, C, T), jnp.float32),
        scratch_shapes=[pltpu.VMEM((C, 1), jnp.float32)] * 4,
        compiler_params=pltpu.CompilerParams(
            # Stats accumulation makes every axis a sequential reduction.
            dimension_semantics=("arbitrary", "arbitrary", "arbitrary"),
            vmem_limit_bytes=48 * 1024 * 1024,
        ),
    )(
        x_nct.astype(jnp.float32),
        w1.astype(jnp.bfloat16),
        w2.astype(jnp.bfloat16),
        g1.reshape(C, 1).astype(jnp.float32),
        b1.reshape(C, 1).astype(jnp.float32),
        g2.reshape(C, 1).astype(jnp.float32),
        b2.reshape(C, 1).astype(jnp.float32),
    )


def _reference(x_nct, w1, w2, g1, b1, g2, b2):
    """Pure-JAX reference matching PyTorch training-mode forward (bf16 matmuls)."""
    xb = x_nct.astype(jnp.bfloat16)
    w1b = w1.astype(jnp.bfloat16)
    w2b = w2.astype(jnp.bfloat16)

    def bn(h, g, b):  # h: (N, C, T), biased batch stats over (N, T)
        mean = jnp.mean(h, axis=(0, 2), keepdims=True)
        var = jnp.mean(jnp.square(h), axis=(0, 2), keepdims=True) - mean * mean
        return (h - mean) * jax.lax.rsqrt(var + _BN_EPS) * g[None, :, None] \
            + b[None, :, None]

    h = jnp.einsum("oc,nct->not", w1b, xb, preferred_element_type=jnp.float32)
    h = jnp.maximum(bn(h, g1, b1), 0.0)
    h2 = jnp.einsum("oc,nct->not", w2b, h.astype(jnp.bfloat16),
                    preferred_element_type=jnp.float32)
    return bn(h2, g2, b2) + x_nct


if __name__ == "__main__":
    # Small shape consistent with Conv1d/BatchNorm1d over (N, C, T).
    # T=400 with t_tile=128 exercises multi-tile accumulation and the
    # ragged-edge masking path.
    N, C, T = 2, 8, 400

    key = jax.random.PRNGKey(0)
    kx, k1, k2 = jax.random.split(key, 3)

    x = jax.random.normal(kx, (N, C, T), dtype=jnp.float32)
    # Conv1d(dims, dims, k=1, bias=False) weights: (C_out, C_in, 1) -> (C, C).
    bound = 1.0 / (C ** 0.5)
    w1 = jax.random.uniform(k1, (C, C), jnp.float32, -bound, bound)
    w2 = jax.random.uniform(k2, (C, C), jnp.float32, -bound, bound)
    # BatchNorm1d default init: weight=1, bias=0.
    g1 = jnp.ones((C,), jnp.float32)
    b1 = jnp.zeros((C,), jnp.float32)
    g2 = jnp.ones((C,), jnp.float32)
    b2 = jnp.zeros((C,), jnp.float32)

    out = resblock_forward(x, w1, w2, g1, b1, g2, b2, t_tile=128)
    out = jax.block_until_ready(out)

    ref = _reference(x, w1, w2, g1, b1, g2, b2)
    assert out.shape == (N, C, T)
    assert out.dtype == jnp.float32
    max_err = float(jnp.max(jnp.abs(out - ref)))
    assert jnp.allclose(out, ref, atol=5e-3, rtol=5e-3), \
        f"mismatch vs reference (max abs err {max_err})"

    # TODO(synk): PyTorch train-mode BatchNorm also updates running_mean/var
    # buffers as a side effect; that bookkeeping is not part of the returned
    # tensor and is not replicated here.
    print("KERNEL_OK")
</pallas_src>

<mosaic_0001>
module attributes {stable_mosaic.version = 11 : i64} {
  func.func @kernel(%arg0: i32, %arg1: i32, %arg2: i32, %arg3: memref<1x8x128xf32, #tpu.memory_space<vmem>>, %arg4: memref<8x8xbf16, #tpu.memory_space<vmem>>, %arg5: memref<8x8xbf16, #tpu.memory_space<vmem>>, %arg6: memref<8x1xf32, #tpu.memory_space<vmem>>, %arg7: memref<8x1xf32, #tpu.memory_space<vmem>>, %arg8: memref<8x1xf32, #tpu.memory_space<vmem>>, %arg9: memref<8x1xf32, #tpu.memory_space<vmem>>, %arg10: memref<1x8x128xf32, #tpu.memory_space<vmem>>, %arg11: memref<8x1xf32, #tpu.memory_space<vmem>>, %arg12: memref<8x1xf32, #tpu.memory_space<vmem>>, %arg13: memref<8x1xf32, #tpu.memory_space<vmem>>, %arg14: memref<8x1xf32, #tpu.memory_space<vmem>>) attributes {dimension_semantics = [#tpu.dimension_semantics<arbitrary>, #tpu.dimension_semantics<arbitrary>, #tpu.dimension_semantics<arbitrary>], iteration_bounds = array<i64: 3, 2, 4>, scalar_prefetch = 0 : i64, scratch_operands = 4 : i64, tpu.core_type = #tpu.core_type<tc>, window_params = [{transform_indices = @transform_0, window_bounds = array<i64: 1, 8, 128>}, {pipeline_mode = #tpu.pipeline_mode<synchronous>, transform_indices = @transform_1, window_bounds = array<i64: 8, 8>}, {pipeline_mode = #tpu.pipeline_mode<synchronous>, transform_indices = @transform_2, window_bounds = array<i64: 8, 8>}, {pipeline_mode = #tpu.pipeline_mode<synchronous>, transform_indices = @transform_3, window_bounds = array<i64: 8, 1>}, {pipeline_mode = #tpu.pipeline_mode<synchronous>, transform_indices = @transform_4, window_bounds = array<i64: 8, 1>}, {pipeline_mode = #tpu.pipeline_mode<synchronous>, transform_indices = @transform_5, window_bounds = array<i64: 8, 1>}, {pipeline_mode = #tpu.pipeline_mode<synchronous>, transform_indices = @transform_6, window_bounds = array<i64: 8, 1>}, {transform_indices = @transform_7, window_bounds = array<i64: 1, 8, 128>}]} {
    %c0_i32 = arith.constant 0 : i32
    %0 = arith.cmpi eq, %arg1, %c0_i32 : i32
    %c0_i32_0 = arith.constant 0 : i32
    %1 = arith.cmpi eq, %arg2, %c0_i32_0 : i32
    %2 = arith.andi %0, %1 : i1
    %c1_i32 = arith.constant 1 : i32
    %3 = arith.cmpi eq, %arg1, %c1_i32 : i32
    %c3_i32 = arith.constant 3 : i32
    %4 = arith.cmpi eq, %arg2, %c3_i32 : i32
    %5 = arith.andi %3, %4 : i1
    %c0 = arith.constant 0 : index
    %c0_1 = arith.constant 0 : index
    %c0_2 = arith.constant 0 : index
    %6 = vector.load %arg3[%c0, %c0_1, %c0_2] : memref<1x8x128xf32, #tpu.memory_space<vmem>>, vector<1x8x128xf32>
    %7 = vector.shape_cast %6 : vector<1x8x128xf32> to vector<8x128xf32>
    %8 = tpu.iota {dimensions = array<i32: 1>} : vector<8x128xi32>
    %c128_i32 = arith.constant 128 : i32
    %9 = arith.muli %arg2, %c128_i32 : i32
    %10 = vector.broadcast %9 : i32 to vector<8x128xi32>
    %11 = arith.addi %10, %8 : vector<8x128xi32>
    %c400_i32 = arith.constant 400 : i32
    %12 = vector.broadcast %c400_i32 : i32 to vector<8x128xi32>
    %13 = arith.cmpi slt, %11, %12 : vector<8x128xi32>
    %cst = arith.constant 0.000000e+00 : f32
    %14 = vector.broadcast %cst : f32 to vector<8x128xf32>
    %15 = arith.select %13, %7, %14 : vector<8x128xi1>, vector<8x128xf32>
    %16 = arith.truncf %15 : vector<8x128xf32> to vector<8x128xbf16>
    %c0_i32_3 = arith.constant 0 : i32
    %17 = arith.cmpi eq, %arg0, %c0_i32_3 : i32
    %18 = arith.extui %17 : i1 to i32
    %c0_i32_4 = arith.constant 0 : i32
    %19 = arith.cmpi ne, %18, %c0_i32_4 : i32
    scf.if %19 {
      %26 = arith.extui %2 : i1 to i32
      %c0_i32_8 = arith.constant 0 : i32
      %27 = arith.cmpi ne, %26, %c0_i32_8 : i32
      scf.if %27 {
        %cst_23 = arith.constant 0.000000e+00 : f32
        %43 = vector.broadcast %cst_23 : f32 to vector<8x1xf32>
        %c0_24 = arith.constant 0 : index
        %c0_25 = arith.constant 0 : index
        %44 = vector.load %arg11[%c0_24, %c0_25] : memref<8x1xf32, #tpu.memory_space<vmem>>, vector<8x1xf32>
        tpu.vector_store %arg11[%c0_24, %c0_25], %43 {strides = array<i32>} : memref<8x1xf32, #tpu.memory_space<vmem>>, vector<8x1xf32>,
        %cst_26 = arith.constant 0.000000e+00 : f32
        %45 = vector.broadcast %cst_26 : f32 to vector<8x1xf32>
        %c0_27 = arith.constant 0 : index
        %c0_28 = arith.constant 0 : index
        %46 = vector.load %arg12[%c0_27, %c0_28] : memref<8x1xf32, #tpu.memory_space<vmem>>, vector<8x1xf32>
        tpu.vector_store %arg12[%c0_27, %c0_28], %45 {strides = array<i32>} : memref<8x1xf32, #tpu.memory_space<vmem>>, vector<8x1xf32>,
      } else {
      }
      %c0_9 = arith.constant 0 : index
      %c0_10 = arith.constant 0 : index
      %28 = vector.load %arg4[%c0_9, %c0_10] : memref<8x8xbf16, #tpu.memory_space<vmem>>, vector<8x8xbf16>
      %cst_11 = arith.constant dense<0.000000e+00> : vector<8x128xf32>
      %29 = tpu.matmul %28, %16, %cst_11 {dimension_numbers = #tpu.dot_dimension_numbers<[1], [0], [0], [1], [0, 0, 1, 1], [], []>} : vector<8x8xbf16>, vector<8x128xbf16>, vector<8x128xf32> -> vector<8x128xf32>
      %c0_12 = arith.constant 0 : index
      %c0_13 = arith.constant 0 : index
      %30 = vector.load %arg11[%c0_12, %c0_13] : memref<8x1xf32, #tpu.memory_space<vmem>>, vector<8x1xf32>
      %cst_14 = arith.constant dense<0.000000e+00> : vector<8xf32>
      %31 = vector.multi_reduction <add>, %29, %cst_14 [1] : vector<8x128xf32> to vector<8xf32>
      %32 = vector.shape_cast %31 : vector<8xf32> to vector<8x1xf32>
      %33 = arith.addf %30, %32 : vector<8x1xf32>
      %c0_15 = arith.constant 0 : index
      %c0_16 = arith.constant 0 : index
      %34 = vector.load %arg11[%c0_15, %c0_16] : memref<8x1xf32, #tpu.memory_space<vmem>>, vector<8x1xf32>
      tpu.vector_store %arg11[%c0_15, %c0_16], %33 {strides = array<i32>} : memref<8x1xf32, #tpu.memory_space<vmem>>, vector<8x1xf32>,
      %c0_17 = arith.constant 0 : index
      %c0_18 = arith.constant 0 : index
      %35 = vector.load %arg12[%c0_17, %c0_18] : memref<8x1xf32, #tpu.memory_space<vmem>>, vector<8x1xf32>
      %36 = arith.mulf %29, %29 : vector<8x128xf32>
      %cst_19 = arith.constant dense<0.000000e+00> : vector<8xf32>
      %37 = vector.multi_reduction <add>, %36, %cst_19 [1] : vector<8x128xf32> to vector<8xf32>
      %38 = vector.shape_cast %37 : vector<8xf32> to vector<8x1xf32>
      %39 = arith.addf %35, %38 : vector<8x1xf32>
      %c0_20 = arith.constant 0 : index
      %c0_21 = arith.constant 0 : index
      %40 = vector.load %arg12[%c0_20, %c0_21] : memref<8x1xf32, #tpu.memory_space<vmem>>, vector<8x1xf32>
      tpu.vector_store %arg12[%c0_20, %c0_21], %39 {strides = array<i32>} : memref<8x1xf32, #tpu.memory_space<vmem>>, vector<8x1xf32>,
      %41 = arith.extui %5 : i1 to i32
      %c0_i32_22 = arith.constant 0 : i32
      %42 = arith.cmpi ne, %41, %c0_i32_22 : i32
      scf.if %42 {
        %c0_23 = arith.constant 0 : index
        %c0_24 = arith.constant 0 : index
        %43 = vector.load %arg11[%c0_23, %c0_24] : memref<8x1xf32, #tpu.memory_space<vmem>>, vector<8x1xf32>
        %cst_25 = arith.constant 1.250000e-03 : f32
        %44 = vector.broadcast %cst_25 : f32 to vector<8x1xf32>
        %45 = arith.mulf %43, %44 : vector<8x1xf32>
        %c0_26 = arith.constant 0 : index
        %c0_27 = arith.constant 0 : index
        %46 = vector.load %arg12[%c0_26, %c0_27] : memref<8x1xf32, #tpu.memory_space<vmem>>, vector<8x1xf32>
        %cst_28 = arith.constant 1.250000e-03 : f32
        %47 = vector.broadcast %cst_28 : f32 to vector<8x1xf32>
        %48 = arith.mulf %46, %47 : vector<8x1xf32>
        %49 = arith.mulf %45, %45 : vector<8x1xf32>
        %50 = arith.subf %48, %49 : vector<8x1xf32>
        %c0_29 = arith.constant 0 : index
        %c0_30 = arith.constant 0 : index
        %51 = vector.load %arg6[%c0_29, %c0_30] : memref<8x1xf32, #tpu.memory_space<vmem>>, vector<8x1xf32>
        %cst_31 = arith.constant 9.99999974E-6 : f32
        %52 = vector.broadcast %cst_31 : f32 to vector<8x1xf32>
        %53 = arith.addf %50, %52 : vector<8x1xf32>
        %54 = math.rsqrt %53 : vector<8x1xf32>
        %55 = arith.mulf %51, %54 : vector<8x1xf32>
        %c0_32 = arith.constant 0 : index
        %c0_33 = arith.constant 0 : index
        %56 = vector.load %arg11[%c0_32, %c0_33] : memref<8x1xf32, #tpu.memory_space<vmem>>, vector<8x1xf32>
        tpu.vector_store %arg11[%c0_32, %c0_33], %55 {strides = array<i32>} : memref<8x1xf32, #tpu.memory_space<vmem>>, vector<8x1xf32>,
        %c0_34 = arith.constant 0 : index
        %c0_35 = arith.constant 0 : index
        %57 = vector.load %arg7[%c0_34, %c0_35] : memref<8x1xf32, #tpu.memory_space<vmem>>, vector<8x1xf32>
        %58 = arith.mulf %45, %55 : vector<8x1xf32>
        %59 = arith.subf %57, %58 : vector<8x1xf32>
        %c0_36 = arith.constant 0 : index
        %c0_37 = arith.constant 0 : index
        %60 = vector.load %arg12[%c0_36, %c0_37] : memref<8x1xf32, #tpu.memory_space<vmem>>, vector<8x1xf32>
        tpu.vector_store %arg12[%c0_36, %c0_37], %59 {strides = array<i32>} : memref<8x1xf32, #tpu.memory_space<vmem>>, vector<8x1xf32>,
      } else {
      }
    } else {
    }
    %c1_i32_5 = arith.constant 1 : i32
    %20 = arith.cmpi eq, %arg0, %c1_i32_5 : i32
    %21 = arith.extui %20 : i1 to i32
    %c0_i32_6 = arith.constant 0 : i32
    %22 = arith.cmpi ne, %21, %c0_i32_6 : i32
    scf.if %22 {
      %26 = arith.extui %2 : i1 to i32
      %c0_i32_8 = arith.constant 0 : i32
      %27 = arith.cmpi ne, %26, %c0_i32_8 : i32
      scf.if %27 {
        %cst_32 = arith.constant 0.000000e+00 : f32
        %56 = vector.broadcast %cst_32 : f32 to vector<8x1xf32>
        %c0_33 = arith.constant 0 : index
        %c0_34 = arith.constant 0 : index
        %57 = vector.load %arg13[%c0_33, %c0_34] : memref<8x1xf32, #tpu.memory_space<vmem>>, vector<8x1xf32>
        tpu.vector_store %arg13[%c0_33, %c0_34], %56 {strides = array<i32>} : memref<8x1xf32, #tpu.memory_space<vmem>>, vector<8x1xf32>,
        %cst_35 = arith.constant 0.000000e+00 : f32
        %58 = vector.broadcast %cst_35 : f32 to vector<8x1xf32>
        %c0_36 = arith.constant 0 : index
        %c0_37 = arith.constant 0 : index
        %59 = vector.load %arg14[%c0_36, %c0_37] : memref<8x1xf32, #tpu.memory_space<vmem>>, vector<8x1xf32>
        tpu.vector_store %arg14[%c0_36, %c0_37], %58 {strides = array<i32>} : memref<8x1xf32, #tpu.memory_space<vmem>>, vector<8x1xf32>,
      } else {
      }
      %c0_9 = arith.constant 0 : index
      %c0_10 = arith.constant 0 : index
      %28 = vector.load %arg4[%c0_9, %c0_10] : memref<8x8xbf16, #tpu.memory_space<vmem>>, vector<8x8xbf16>
      %cst_11 = arith.constant dense<0.000000e+00> : vector<8x128xf32>
      %29 = tpu.matmul %28, %16, %cst_11 {dimension_numbers = #tpu.dot_dimension_numbers<[1], [0], [0], [1], [0, 0, 1, 1], [], []>} : vector<8x8xbf16>, vector<8x128xbf16>, vector<8x128xf32> -> vector<8x128xf32>
      %c0_12 = arith.constant 0 : index
      %c0_13 = arith.constant 0 : index
      %30 = vector.load %arg11[%c0_12, %c0_13] : memref<8x1xf32, #tpu.memory_space<vmem>>, vector<8x1xf32>
      %31 = vector.broadcast %30 : vector<8x1xf32> to vector<8x128xf32>
      %32 = arith.mulf %29, %31 : vector<8x128xf32>
      %c0_14 = arith.constant 0 : index
      %c0_15 = arith.constant 0 : index
      %33 = vector.load %arg12[%c0_14, %c0_15] : memref<8x1xf32, #tpu.memory_space<vmem>>, vector<8x1xf32>
      %34 = vector.broadcast %33 : vector<8x1xf32> to vector<8x128xf32>
      %35 = arith.addf %32, %34 : vector<8x128xf32>
      %cst_16 = arith.constant 0.000000e+00 : f32
      %36 = vector.broadcast %cst_16 : f32 to vector<8x128xf32>
      %37 = arith.maximumf %35, %36 : vector<8x128xf32>
      %c0_17 = arith.constant 0 : index
      %c0_18 = arith.constant 0 : index
      %38 = vector.load %arg5[%c0_17, %c0_18] : memref<8x8xbf16, #tpu.memory_space<vmem>>, vector<8x8xbf16>
      %39 = arith.truncf %37 : vector<8x128xf32> to vector<8x128xbf16>
      %cst_19 = arith.constant dense<0.000000e+00> : vector<8x128xf32>
      %40 = tpu.matmul %38, %39, %cst_19 {dimension_numbers = #tpu.dot_dimension_numbers<[1], [0], [0], [1], [0, 0, 1, 1], [], []>} : vector<8x8xbf16>, vector<8x128xbf16>, vector<8x128xf32> -> vector<8x128xf32>
      %cst_20 = arith.constant 0.000000e+00 : f32
      %41 = vector.broadcast %cst_20 : f32 to vector<8x128xf32>
      %42 = arith.select %13, %40, %41 : vector<8x128xi1>, vector<8x128xf32>
      %c0_21 = arith.constant 0 : index
      %c0_22 = arith.constant 0 : index
      %43 = vector.load %arg13[%c0_21, %c0_22] : memref<8x1xf32, #tpu.memory_space<vmem>>, vector<8x1xf32>
      %cst_23 = arith.constant dense<0.000000e+00> : vector<8xf32>
      %44 = vector.multi_reduction <add>, %42, %cst_23 [1] : vector<8x128xf32> to vector<8xf32>
      %45 = vector.shape_cast %44 : vector<8xf32> to vector<8x1xf32>
      %46 = arith.addf %43, %45 : vector<8x1xf32>
      %c0_24 = arith.constant 0 : index
      %c0_25 = arith.constant 0 : index
      %47 = vector.load %arg13[%c0_24, %c0_25] : memref<8x1xf32, #tpu.memory_space<vmem>>, vector<8x1xf32>
      tpu.vector_store %arg13[%c0_24, %c0_25], %46 {strides = array<i32>} : memref<8x1xf32, #tpu.memory_space<vmem>>, vector<8x1xf32>,
      %c0_26 = arith.constant 0 : index
      %c0_27 = arith.constant 0 : index
      %48 = vector.load %arg14[%c0_26, %c0_27] : memref<8x1xf32, #tpu.memory_space<vmem>>, vector<8x1xf32>
      %49 = arith.mulf %42, %42 : vector<8x128xf32>
      %cst_28 = arith.constant dense<0.000000e+00> : vector<8xf32>
      %50 = vector.multi_reduction <add>, %49, %cst_28 [1] : vector<8x128xf32> to vector<8xf32>
      %51 = vector.shape_cast %50 : vector<8xf32> to vector<8x1xf32>
      %52 = arith.addf %48, %51 : vector<8x1xf32>
      %c0_29 = arith.constant 0 : index
      %c0_30 = arith.constant 0 : index
      %53 = vector.load %arg14[%c0_29, %c0_30] : memref<8x1xf32, #tpu.memory_space<vmem>>, vector<8x1xf32>
      tpu.vector_store %arg14[%c0_29, %c0_30], %52 {strides = array<i32>} : memref<8x1xf32, #tpu.memory_space<vmem>>, vector<8x1xf32>,
      %54 = arith.extui %5 : i1 to i32
      %c0_i32_31 = arith.constant 0 : i32
      %55 = arith.cmpi ne, %54, %c0_i32_31 : i32
      scf.if %55 {
        %c0_32 = arith.constant 0 : index
        %c0_33 = arith.constant 0 : index
        %56 = vector.load %arg13[%c0_32, %c0_33] : memref<8x1xf32, #tpu.memory_space<vmem>>, vector<8x1xf32>
        %cst_34 = arith.constant 1.250000e-03 : f32
        %57 = vector.broadcast %cst_34 : f32 to vector<8x1xf32>
        %58 = arith.mulf %56, %57 : vector<8x1xf32>
        %c0_35 = arith.constant 0 : index
        %c0_36 = arith.constant 0 : index
        %59 = vector.load %arg14[%c0_35, %c0_36] : memref<8x1xf32, #tpu.memory_space<vmem>>, vector<8x1xf32>
        %cst_37 = arith.constant 1.250000e-03 : f32
        %60 = vector.broadcast %cst_37 : f32 to vector<8x1xf32>
        %61 = arith.mulf %59, %60 : vector<8x1xf32>
        %62 = arith.mulf %58, %58 : vector<8x1xf32>
        %63 = arith.subf %61, %62 : vector<8x1xf32>
        %c0_38 = arith.constant 0 : index
        %c0_39 = arith.constant 0 : index
        %64 = vector.load %arg8[%c0_38, %c0_39] : memref<8x1xf32, #tpu.memory_space<vmem>>, vector<8x1xf32>
        %cst_40 = arith.constant 9.99999974E-6 : f32
        %65 = vector.broadcast %cst_40 : f32 to vector<8x1xf32>
        %66 = arith.addf %63, %65 : vector<8x1xf32>
        %67 = math.rsqrt %66 : vector<8x1xf32>
        %68 = arith.mulf %64, %67 : vector<8x1xf32>
        %c0_41 = arith.constant 0 : index
        %c0_42 = arith.constant 0 : index
        %69 = vector.load %arg13[%c0_41, %c0_42] : memref<8x1xf32, #tpu.memory_space<vmem>>, vector<8x1xf32>
        tpu.vector_store %arg13[%c0_41, %c0_42], %68 {strides = array<i32>} : memref<8x1xf32, #tpu.memory_space<vmem>>, vector<8x1xf32>,
        %c0_43 = arith.constant 0 : index
        %c0_44 = arith.constant 0 : index
        %70 = vector.load %arg9[%c0_43, %c0_44] : memref<8x1xf32, #tpu.memory_space<vmem>>, vector<8x1xf32>
        %71 = arith.mulf %58, %68 : vector<8x1xf32>
        %72 = arith.subf %70, %71 : vector<8x1xf32>
        %c0_45 = arith.constant 0 : index
        %c0_46 = arith.constant 0 : index
        %73 = vector.load %arg14[%c0_45, %c0_46] : memref<8x1xf32, #tpu.memory_space<vmem>>, vector<8x1xf32>
        tpu.vector_store %arg14[%c0_45, %c0_46], %72 {strides = array<i32>} : memref<8x1xf32, #tpu.memory_space<vmem>>, vector<8x1xf32>,
      } else {
      }
    } else {
    }
    %c2_i32 = arith.constant 2 : i32
    %23 = arith.cmpi eq, %arg0, %c2_i32 : i32
    %24 = arith.extui %23 : i1 to i32
    %c0_i32_7 = arith.constant 0 : i32
    %25 = arith.cmpi ne, %24, %c0_i32_7 : i32
    scf.if %25 {
      %c0_8 = arith.constant 0 : index
      %c0_9 = arith.constant 0 : index
      %26 = vector.load %arg4[%c0_8, %c0_9] : memref<8x8xbf16, #tpu.memory_space<vmem>>, vector<8x8xbf16>
      %cst_10 = arith.constant dense<0.000000e+00> : vector<8x128xf32>
      %27 = tpu.matmul %26, %16, %cst_10 {dimension_numbers = #tpu.dot_dimension_numbers<[1], [0], [0], [1], [0, 0, 1, 1], [], []>} : vector<8x8xbf16>, vector<8x128xbf16>, vector<8x128xf32> -> vector<8x128xf32>
      %c0_11 = arith.constant 0 : index
      %c0_12 = arith.constant 0 : index
      %28 = vector.load %arg11[%c0_11, %c0_12] : memref<8x1xf32, #tpu.memory_space<vmem>>, vector<8x1xf32>
      %29 = vector.broadcast %28 : vector<8x1xf32> to vector<8x128xf32>
      %30 = arith.mulf %27, %29 : vector<8x128xf32>
      %c0_13 = arith.constant 0 : index
      %c0_14 = arith.constant 0 : index
      %31 = vector.load %arg12[%c0_13, %c0_14] : memref<8x1xf32, #tpu.memory_space<vmem>>, vector<8x1xf32>
      %32 = vector.broadcast %31 : vector<8x1xf32> to vector<8x128xf32>
      %33 = arith.addf %30, %32 : vector<8x128xf32>
      %cst_15 = arith.constant 0.000000e+00 : f32
      %34 = vector.broadcast %cst_15 : f32 to vector<8x128xf32>
      %35 = arith.maximumf %33, %34 : vector<8x128xf32>
      %c0_16 = arith.constant 0 : index
      %c0_17 = arith.constant 0 : index
      %36 = vector.load %arg5[%c0_16, %c0_17] : memref<8x8xbf16, #tpu.memory_space<vmem>>, vector<8x8xbf16>
      %37 = arith.truncf %35 : vector<8x128xf32> to vector<8x128xbf16>
      %cst_18 = arith.constant dense<0.000000e+00> : vector<8x128xf32>
      %38 = tpu.matmul %36, %37, %cst_18 {dimension_numbers = #tpu.dot_dimension_numbers<[1], [0], [0], [1], [0, 0, 1, 1], [], []>} : vector<8x8xbf16>, vector<8x128xbf16>, vector<8x128xf32> -> vector<8x128xf32>
      %c0_19 = arith.constant 0 : index
      %c0_20 = arith.constant 0 : index
      %39 = vector.load %arg13[%c0_19, %c0_20] : memref<8x1xf32, #tpu.memory_space<vmem>>, vector<8x1xf32>
      %40 = vector.broadcast %39 : vector<8x1xf32> to vector<8x128xf32>
      %41 = arith.mulf %38, %40 : vector<8x128xf32>
      %c0_21 = arith.constant 0 : index
      %c0_22 = arith.constant 0 : index
      %42 = vector.load %arg14[%c0_21, %c0_22] : memref<8x1xf32, #tpu.memory_space<vmem>>, vector<8x1xf32>
      %43 = vector.broadcast %42 : vector<8x1xf32> to vector<8x128xf32>
      %44 = arith.addf %41, %43 : vector<8x128xf32>
      %45 = arith.addf %44, %15 : vector<8x128xf32>
      %c0_23 = arith.constant 0 : index
      %c0_24 = arith.constant 0 : index
      %c0_25 = arith.constant 0 : index
      %46 = vector.load %arg10[%c0_23, %c0_24, %c0_25] : memref<1x8x128xf32, #tpu.memory_space<vmem>>, vector<1x8x128xf32>
      %47 = vector.shape_cast %46 : vector<1x8x128xf32> to vector<8x128xf32>
      %48 = vector.shape_cast %45 : vector<8x128xf32> to vector<1x8x128xf32>
      tpu.vector_store %arg10[%c0_23, %c0_24, %c0_25], %48 {strides = array<i32>} : memref<1x8x128xf32, #tpu.memory_space<vmem>>, vector<1x8x128xf32>,
    } else {
    }
    return
  }
  func.func @transform_0(%arg0: i32, %arg1: i32, %arg2: i32) -> (i32, i32, i32) {
    %c0_i32 = arith.constant 0 : i32
    %c0_i32_0 = arith.constant 0 : i32
    return %arg1, %c0_i32, %arg2 : i32, i32, i32
  }
  func.func @transform_1(%arg0: i32, %arg1: i32, %arg2: i32) -> (i32, i32) {
    %c0_i32 = arith.constant 0 : i32
    %c0_i32_0 = arith.constant 0 : i32
    %c0_i32_1 = arith.constant 0 : i32
    return %c0_i32, %c0_i32_0 : i32, i32
  }
  func.func @transform_2(%arg0: i32, %arg1: i32, %arg2: i32) -> (i32, i32) {
    %c0_i32 = arith.constant 0 : i32
    %c0_i32_0 = arith.constant 0 : i32
    %c0_i32_1 = arith.constant 0 : i32
    return %c0_i32, %c0_i32_0 : i32, i32
  }
  func.func @transform_3(%arg0: i32, %arg1: i32, %arg2: i32) -> (i32, i32) {
    %c0_i32 = arith.constant 0 : i32
    %c0_i32_0 = arith.constant 0 : i32
    %c0_i32_1 = arith.constant 0 : i32
    return %c0_i32, %c0_i32_0 : i32, i32
  }
  func.func @transform_4(%arg0: i32, %arg1: i32, %arg2: i32) -> (i32, i32) {
    %c0_i32 = arith.constant 0 : i32
    %c0_i32_0 = arith.constant 0 : i32
    %c0_i32_1 = arith.constant 0 : i32
    return %c0_i32, %c0_i32_0 : i32, i32
  }
  func.func @transform_5(%arg0: i32, %arg1: i32, %arg2: i32) -> (i32, i32) {
    %c0_i32 = arith.constant 0 : i32
    %c0_i32_0 = arith.constant 0 : i32
    %c0_i32_1 = arith.constant 0 : i32
    return %c0_i32, %c0_i32_0 : i32, i32
  }
  func.func @transform_6(%arg0: i32, %arg1: i32, %arg2: i32) -> (i32, i32) {
    %c0_i32 = arith.constant 0 : i32
    %c0_i32_0 = arith.constant 0 : i32
    %c0_i32_1 = arith.constant 0 : i32
    return %c0_i32, %c0_i32_0 : i32, i32
  }
  func.func @transform_7(%arg0: i32, %arg1: i32, %arg2: i32) -> (i32, i32, i32) {
    %c2_i32 = arith.constant 2 : i32
    %0 = arith.cmpi eq, %arg0, %c2_i32 : i32
    %c0_i32 = arith.constant 0 : i32
    %1 = arith.select %0, %arg1, %c0_i32 : i32
    %c0_i32_0 = arith.constant 0 : i32
    %2 = arith.select %0, %arg2, %c0_i32_0 : i32
    %c0_i32_1 = arith.constant 0 : i32
    %c0_i32_2 = arith.constant 0 : i32
    return %1, %c0_i32_1, %2 : i32, i32, i32
  }
}

</mosaic_0001>

<llo_original>
// kernel: resblock_forward.1
$region0: #{resblock_forward.1}
  #allocation0 [shape = 'u32[]', space=smem, size = 0x4, offset = 0x4, fixed_abs, tag = 'smem constant byte address 0x4 - core index']
  #allocation1 [shape = 'u32[72,128]{1,0:T(1,128)}', space=vmem, size = 0x9000, scoped, tag = 'internal scratch']
  #allocation2 [shape = 'f32[8,1]{1,0:T(8,128)}', space=vmem, size = 0x1000, scoped, tag = 'scratch operand']
  #allocation3 [shape = 'f32[8,1]{1,0:T(8,128)}', space=vmem, size = 0x1000, scoped, tag = 'scratch operand']
  #allocation4 [shape = 'f32[8,1]{1,0:T(8,128)}', space=vmem, size = 0x1000, scoped, tag = 'scratch operand']
  #allocation5 [shape = 'f32[8,1]{1,0:T(8,128)}', space=vmem, size = 0x1000, scoped, tag = 'scratch operand']
  %s0 = inlined_call_operand.hbm [shape: f32[2,8,400], index: 0, kind: input, shape index: {}]
  %s1 = inlined_call_operand.vmem [shape: bf16[8,8], index: 1, kind: input, shape index: {}]
  %s2 = inlined_call_operand.vmem [shape: bf16[8,8], index: 2, kind: input, shape index: {}]
  %s3 = inlined_call_operand.vmem [shape: f32[8,1], index: 3, kind: input, shape index: {}]
  %s4 = inlined_call_operand.vmem [shape: f32[8,1], index: 4, kind: input, shape index: {}]
  %s5 = inlined_call_operand.vmem [shape: f32[8,1], index: 5, kind: input, shape index: {}]
  %s6 = inlined_call_operand.vmem [shape: f32[8,1], index: 6, kind: input, shape index: {}]
  %s7 = inlined_call_operand.hbm [shape: f32[2,8,400], index: 7, kind: output, shape index: {}]
  %s8 = sld [smem:[#allocation0]]
  $region93: #{resblock_forward.1} parent=0
    _
  %s10 = ssub.s32 1, %s8
  %s11 = scalar_select 0, %s10, %s8
  $region1: #{resblock_forward.1} parent=0
    #allocation6 [shape = 'u8[8192]{0}', space=vmem, size = 0x2000, scoped, tag = 'input window, operand 0']
    #allocation7 [shape = 's32[2]{0}', space=sflag, size = 0x8, scoped, tag = 'scoped memory for resblock_forward.1']
    #allocation8 [shape = 's32[2]{0}', space=sflag, size = 0x8, scoped, tag = 'scoped memory for resblock_forward.1']
    #allocation9 [shape = 'u8[8192]{0}', space=vmem, size = 0x2000, scoped, tag = 'output window, operand 0']
    %12 = vsyncpa [#allocation7], 0
    %s13 = scalar_lea.sflag [#allocation7], 1
    %14 = vsyncpa %s13, 0
    %15 = vsyncpa [#allocation8], 0
    %s16 = scalar_lea.sflag [#allocation8], 1
    %17 = vsyncpa %s16, 0
    loop: start=0, step=1, limit=26
    $region2: #{resblock_forward.1} parent=1 // loop_pre_header
      _
    $region3: #{resblock_forward.1} parent=1 // loop_header
      %s19 = sphi 0, %s23
      %p20 = scmp.ge.s32.totalorder %s19, 26
      %s26 = sphi 0, %s45
      %s27 = sphi 0, %s41
      %s28 = sphi 0, %s37
      %s29 = sphi 0, %s26
      %s30 = sphi 0, %s27
      %s31 = sphi 0, %s28
      %s32 = sphi 0, %s29
      %s33 = sphi 0, %s30
      %s34 = sphi 0, %s31
      %s50 = sphi 0, %s52
      %s53 = sphi 0, %s50
      %s54 = sphi 0, %s53
      %s70 = sphi 0, %s54
      %s74 = sphi 0, %s74
      %s76 = sphi 0, %s74
      %s77 = sphi 0, %s76
      %s91 = sphi 0, %s77
      %s95 = sphi 0, %s95
      %s97 = sphi 0, %s95
      %s98 = sphi 0, %s97
      %s112 = sphi 0, %s98
      %s116 = sphi 0, %s116
      %s118 = sphi 0, %s116
      %s119 = sphi 0, %s118
      %s133 = sphi 0, %s119
      %s137 = sphi 0, %s137
      %s139 = sphi 0, %s137
      %s140 = sphi 0, %s139
      %s154 = sphi 0, %s140
      %s158 = sphi 0, %s158
      %s160 = sphi 0, %s158
      %s161 = sphi 0, %s160
      %s175 = sphi 0, %s161
      %s179 = sphi 0, %s179
      %s181 = sphi 0, %s179
      %s182 = sphi 0, %s181
      %s196 = sphi 0, %s182
      %s210 = sphi 0, %s212
      %s213 = sphi 0, %s210
      %s214 = sphi 0, %s213
      %s230 = sphi 0, %s214
    $region4: #{resblock_forward.1} parent=1 // loop_header_branch
      %22 = sbr.rel (%p20) target = $region8
    $region5: #{resblock_forward.1} parent=1 // loop_body
      %s24 = ssub.s32 %s19, 1
      %s25 = ssub.s32 %s19, 2
      %s35 = sadd.s32 1, %s28
      %p36 = scmp.ge.s32.totalorder %s35, 4
      %s37 = scalar_select %p36, 0, %s35
      %s38 = sadd.s32 1, %s27
      %s39 = scalar_select %p36, %s38, %s27
      %p40 = scmp.ge.s32.totalorder %s39, 2
      %s41 = scalar_select %p40, 0, %s39
      %s42 = sadd.s32 1, %s26
      %s43 = scalar_select %p40, %s42, %s26
      %p44 = scmp.ge.s32.totalorder %s43, 3
      %s45 = scalar_select %p44, 0, %s43
      %s46 = ssub.s32 %s27, %s41
      %s47 = ssub.s32 %s28, %s37
      %s48 = sor.u32 %s46, %s47
      %p49 = scmp.eq.s32.totalorder %s48, 0
      %s51 = sadd.s32 %s50, 1
      %s52 = scalar_select %p49, %s50, %s51
      %p55 = pneg %p49
      %p56 = scmp.eq.s32.totalorder %s19, 23
      %p57 = por %p55, %p56
      %p58 = scmp.ne.s32.totalorder %s50, %s53
      %p59 = scmp.eq.s32.totalorder %s19, 0
      %p60 = por %p58, %p59
      %p61 = scmp.ne.s32.totalorder %s50, %s53
      %p62 = scmp.eq.s32.totalorder %s24, 23
      %p63 = por %p61, %p62
      %p64 = scmp.ne.s32.totalorder %s53, %s54
      %p65 = scmp.eq.s32.totalorder %s24, 0
      %p66 = por %p64, %p65
      %p67 = scmp.ne.s32.totalorder %s53, %s54
      %p68 = scmp.eq.s32.totalorder %s25, 23
      %p69 = por %p67, %p68
      %p71 = scmp.ne.s32.totalorder %s54, %s70
      %p72 = scmp.eq.s32.totalorder %s25, 0
      %p73 = por %p71, %p72
      %s75 = sadd.s32 %s74, 1
      %p78 = scmp.eq.s32.totalorder %s19, 23
      %p79 = scmp.ne.s32.totalorder %s74, %s76
      %p80 = scmp.eq.s32.totalorder %s19, 0
      %p81 = por %p79, %p80
      %p82 = scmp.ne.s32.totalorder %s74, %s76
      %p83 = scmp.eq.s32.totalorder %s24, 23
      %p84 = por %p82, %p83
      %p85 = scmp.ne.s32.totalorder %s76, %s77
      %p86 = scmp.eq.s32.totalorder %s24, 0
      %p87 = por %p85, %p86
      %p88 = scmp.ne.s32.totalorder %s76, %s77
      %p89 = scmp.eq.s32.totalorder %s25, 23
      %p90 = por %p88, %p89
      %p92 = scmp.ne.s32.totalorder %s77, %s91
      %p93 = scmp.eq.s32.totalorder %s25, 0
      %p94 = por %p92, %p93
      %s96 = sadd.s32 %s95, 1
      %p99 = scmp.eq.s32.totalorder %s19, 23
      %p100 = scmp.ne.s32.totalorder %s95, %s97
      %p101 = scmp.eq.s32.totalorder %s19, 0
      %p102 = por %p100, %p101
      %p103 = scmp.ne.s32.totalorder %s95, %s97
      %p104 = scmp.eq.s32.totalorder %s24, 23
      %p105 = por %p103, %p104
      %p106 = scmp.ne.s32.totalorder %s97, %s98
      %p107 = scmp.eq.s32.totalorder %s24, 0
      %p108 = por %p106, %p107
      %p109 = scmp.ne.s32.totalorder %s97, %s98
      %p110 = scmp.eq.s32.totalorder %s25, 23
      %p111 = por %p109, %p110
      %p113 = scmp.ne.s32.totalorder %s98, %s112
      %p114 = scmp.eq.s32.totalorder %s25, 0
      %p115 = por %p113, %p114
      %s117 = sadd.s32 %s116, 1
      %p120 = scmp.eq.s32.totalorder %s19, 23
      %p121 = scmp.ne.s32.totalorder %s116, %s118
      %p122 = scmp.eq.s32.totalorder %s19, 0
      %p123 = por %p121, %p122
      %p124 = scmp.ne.s32.totalorder %s116, %s118
      %p125 = scmp.eq.s32.totalorder %s24, 23
      %p126 = por %p124, %p125
      %p127 = scmp.ne.s32.totalorder %s118, %s119
      %p128 = scmp.eq.s32.totalorder %s24, 0
      %p129 = por %p127, %p128
      %p130 = scmp.ne.s32.totalorder %s118, %s119
      %p131 = scmp.eq.s32.totalorder %s25, 23
      %p132 = por %p130, %p131
      %p134 = scmp.ne.s32.totalorder %s119, %s133
      %p135 = scmp.eq.s32.totalorder %s25, 0
      %p136 = por %p134, %p135
      %s138 = sadd.s32 %s137, 1
      %p141 = scmp.eq.s32.totalorder %s19, 23
      %p142 = scmp.ne.s32.totalorder %s137, %s139
      %p143 = scmp.eq.s32.totalorder %s19, 0
      %p144 = por %p142, %p143
      %p145 = scmp.ne.s32.totalorder %s137, %s139
      %p146 = scmp.eq.s32.totalorder %s24, 23
      %p147 = por %p145, %p146
      %p148 = scmp.ne.s32.totalorder %s139, %s140
      %p149 = scmp.eq.s32.totalorder %s24, 0
      %p150 = por %p148, %p149
      %p151 = scmp.ne.s32.totalorder %s139, %s140
      %p152 = scmp.eq.s32.totalorder %s25, 23
      %p153 = por %p151, %p152
      %p155 = scmp.ne.s32.totalorder %s140, %s154
      %p156 = scmp.eq.s32.totalorder %s25, 0
      %p157 = por %p155, %p156
      %s159 = sadd.s32 %s158, 1
      %p162 = scmp.eq.s32.totalorder %s19, 23
      %p163 = scmp.ne.s32.totalorder %s158, %s160
      %p164 = scmp.eq.s32.totalorder %s19, 0
      %p165 = por %p163, %p164
      %p166 = scmp.ne.s32.totalorder %s158, %s160
      %p167 = scmp.eq.s32.totalorder %s24, 23
      %p168 = por %p166, %p167
      %p169 = scmp.ne.s32.totalorder %s160, %s161
      %p170 = scmp.eq.s32.totalorder %s24, 0
      %p171 = por %p169, %p170
      %p172 = scmp.ne.s32.totalorder %s160, %s161
      %p173 = scmp.eq.s32.totalorder %s25, 23
      %p174 = por %p172, %p173
      %p176 = scmp.ne.s32.totalorder %s161, %s175
      %p177 = scmp.eq.s32.totalorder %s25, 0
      %p178 = por %p176, %p177
      %s180 = sadd.s32 %s179, 1
      %p183 = scmp.eq.s32.totalorder %s19, 23
      %p184 = scmp.ne.s32.totalorder %s179, %s181
      %p185 = scmp.eq.s32.totalorder %s19, 0
      %p186 = por %p184, %p185
      %p187 = scmp.ne.s32.totalorder %s179, %s181
      %p188 = scmp.eq.s32.totalorder %s24, 23
      %p189 = por %p187, %p188
      %p190 = scmp.ne.s32.totalorder %s181, %s182
      %p191 = scmp.eq.s32.totalorder %s24, 0
      %p192 = por %p190, %p191
      %p193 = scmp.ne.s32.totalorder %s181, %s182
      %p194 = scmp.eq.s32.totalorder %s25, 23
      %p195 = por %p193, %p194
      %p197 = scmp.ne.s32.totalorder %s182, %s196
      %p198 = scmp.eq.s32.totalorder %s25, 0
      %p199 = por %p197, %p198
      %p200 = scmp.eq.s32.totalorder %s26, 2
      %s201 = scalar_select %p200, %s27, 0
      %s202 = scalar_select %p200, %s28, 0
      %p203 = scmp.eq.s32.totalorder %s45, 2
      %s204 = scalar_select %p203, %s41, 0
      %s205 = scalar_select %p203, %s37, 0
      %s206 = ssub.s32 %s201, %s204
      %s207 = ssub.s32 %s202, %s205
      %s208 = sor.u32 %s206, %s207
      %p209 = scmp.eq.s32.totalorder %s208, 0
      %s211 = sadd.s32 %s210, 1
      %s212 = scalar_select %p209, %s210, %s211
      %p215 = pneg %p209
      %p216 = scmp.eq.s32.totalorder %s19, 23
      %p217 = por %p215, %p216
      %p218 = scmp.ne.s32.totalorder %s210, %s213
      %p219 = scmp.eq.s32.totalorder %s19, 0
      %p220 = por %p218, %p219
      %p221 = scmp.ne.s32.totalorder %s210, %s213
      %p222 = scmp.eq.s32.totalorder %s24, 23
      %p223 = por %p221, %p222
      %p224 = scmp.ne.s32.totalorder %s213, %s214
      %p225 = scmp.eq.s32.totalorder %s24, 0
      %p226 = por %p224, %p225
      %p227 = scmp.ne.s32.totalorder %s213, %s214
      %p228 = scmp.eq.s32.totalorder %s25, 23
      %p229 = por %p227, %p228
      %p231 = scmp.ne.s32.totalorder %s214, %s230
      %p232 = scmp.eq.s32.totalorder %s25, 0
      %p233 = por %p231, %p232
      %p234 = scmp.le.s32.totalorder 1, %s19
      %p235 = scmp.lt.s32.totalorder %s19, 25
      %p236 = pnand %p234, %p235
      %p237 = pneg %p236
      // Predicated region
      $region9: #{resblock_forward.1} parent=5 // pred_check
        _
      $region10: #{resblock_forward.1} parent=5 // pred_check_branch
        %239 = sbr.rel (%p236) target = $region12
      $region11: #{resblock_forward.1} parent=5 // pred_region
        %s240 = ssub.s32 %s19, 1
        // Predicated region
        $region13: #{resblock_forward.1} parent=11 // pred_check
          %p241 = pneg %p87
        $region14: #{resblock_forward.1} parent=11 // pred_check_branch
          %243 = sbr.rel (%p241) target = $region16
        $region15: #{resblock_forward.1} parent=11 // pred_region
          _
        $region16: #{resblock_forward.1} parent=11 // pred_fallthru
          _
        // Predicated region
        $region17: #{resblock_forward.1} parent=11 // pred_check
          %p244 = pneg %p108
        $region18: #{resblock_forward.1} parent=11 // pred_check_branch
          %246 = sbr.rel (%p244) target = $region20
        $region19: #{resblock_forward.1} parent=11 // pred_region
          _
        $region20: #{resblock_forward.1} parent=11 // pred_fallthru
          _
        // Predicated region
        $region21: #{resblock_forward.1} parent=11 // pred_check
          %p247 = pneg %p129
        $region22: #{resblock_forward.1} parent=11 // pred_check_branch
          %249 = sbr.rel (%p247) target = $region24
        $region23: #{resblock_forward.1} parent=11 // pred_region
          _
        $region24: #{resblock_forward.1} parent=11 // pred_fallthru
          _
        // Predicated region
        $region25: #{resblock_forward.1} parent=11 // pred_check
          %p250 = pneg %p150
        $region26: #{resblock_forward.1} parent=11 // pred_check_branch
          %252 = sbr.rel (%p250) target = $region28
        $region27: #{resblock_forward.1} parent=11 // pred_region
          _
        $region28: #{resblock_forward.1} parent=11 // pred_fallthru
          _
        // Predicated region
        $region29: #{resblock_forward.1} parent=11 // pred_check
          %p253 = pneg %p171
        $region30: #{resblock_forward.1} parent=11 // pred_check_branch
          %255 = sbr.rel (%p253) target = $region32
        $region31: #{resblock_forward.1} parent=11 // pred_region
          _
        $region32: #{resblock_forward.1} parent=11 // pred_fallthru
          _
        // Predicated region
        $region33: #{resblock_forward.1} parent=11 // pred_check
          %p256 = pneg %p192
        $region34: #{resblock_forward.1} parent=11 // pred_check_branch
          %258 = sbr.rel (%p256) target = $region36
        $region35: #{resblock_forward.1} parent=11 // pred_region
          _
        $region36: #{resblock_forward.1} parent=11 // pred_fallthru
          _
      $region12: #{resblock_forward.1} parent=5 // pred_fallthru
        _
      %p259 = scmp.lt.s32.totalorder %s19, 24
      // Predicated region
      $region37: #{resblock_forward.1} parent=5 // pred_check
        %p260 = pneg %p259
      $region38: #{resblock_forward.1} parent=5 // pred_check_branch
        %262 = sbr.rel (%p260) target = $region40
      $region39: #{resblock_forward.1} parent=5 // pred_region
        // Predicated region
        $region41: #{resblock_forward.1} parent=39 // pred_check
          %p263 = pneg %p60
        $region42: #{resblock_forward.1} parent=39 // pred_check_branch
          %265 = sbr.rel (%p263) target = $region44
        $region43: #{resblock_forward.1} parent=39 // pred_region
          %s266 = sand.u32 %s50, 1
          %s267 = scalar_lea.sflag [#allocation7], %s266
          %s268 = sand.u32 %s50, 1
          %s269 = smul.addr %s268, 8
          %s270 = scalar_lea.vmem [#allocation6], %s269
          %272 = vsyncadd %s267, 0
          %s273 = smul.addr %s27, 4
          %s274 = sadd.s32 %s28, %s273
          %s275 = smul.addr %s274, 8
          %s276 = scalar_lea.hbm %s0, %s275
          %s278 = sshll.u32 %s276, 4
          %s279 = int_to_ptr.hbm [resolvable:$true] %s278
          %s280 = sshll.u32 %s270, 4
          %s281 = int_to_ptr.vmem [resolvable:$true] %s280
          %283 = dma.hbm_to_vmem [thread:$0]  %s279, 128, %s281, %s267
        $region44: #{resblock_forward.1} parent=39 // pred_fallthru
          _
      $region40: #{resblock_forward.1} parent=5 // pred_fallthru
        _
      %p284 = scmp.le.s32.totalorder 1, %s19
      %p285 = scmp.lt.s32.totalorder %s19, 25
      %p286 = pnand %p284, %p285
      %p287 = pneg %p286
      // Predicated region
      $region45: #{resblock_forward.1} parent=5 // pred_check
        _
      $region46: #{resblock_forward.1} parent=5 // pred_check_branch
        %289 = sbr.rel (%p286) target = $region48
      $region47: #{resblock_forward.1} parent=5 // pred_region
        %s290 = ssub.s32 %s19, 1
        %s291 = sand.u32 %s53, 1
        %s292 = scalar_lea.sflag [#allocation7], %s291
        %s293 = sand.u32 %s53, 1
        %s294 = smul.addr %s293, 8
        %s295 = scalar_lea.vmem [#allocation6], %s294
        // Predicated region
        $region49: #{resblock_forward.1} parent=47 // pred_check
          %p296 = pneg %p66
        $region50: #{resblock_forward.1} parent=47 // pred_check_branch
          %298 = sbr.rel (%p296) target = $region52
        $region51: #{resblock_forward.1} parent=47 // pred_region
          %300 = dma.done %s292, 128
        $region52: #{resblock_forward.1} parent=47 // pred_fallthru
          _
        %s301 = sand.u32 %s53, 1
        %s302 = scalar_lea.sflag [#allocation7], %s301
        %s303 = sand.u32 %s53, 1
        %s304 = smul.addr %s303, 8
        %s305 = scalar_lea.vmem [#allocation6], %s304
        %p306 = pneg %p66
        %p307 = pneg %p63
        %p308 = pneg %p87
        %p309 = pneg %p84
        %p310 = pneg %p108
        %p311 = pneg %p105
        %p312 = pneg %p129
        %p313 = pneg %p126
        %p314 = pneg %p150
        %p315 = pneg %p147
        %p316 = pneg %p171
        %p317 = pneg %p168
        %p318 = pneg %p192
        %p319 = pneg %p189
        %p320 = pneg %p226
        %p321 = pneg %p223
        %s322 = sand.u32 %s213, 1
        %s323 = scalar_lea.sflag [#allocation8], %s322
        %s324 = sand.u32 %s213, 1
        %s325 = smul.addr %s324, 8
        %s326 = scalar_lea.vmem [#allocation9], %s325
        %p327 = scmp.eq.s32.totalorder %s29, 2
        %s328 = scalar_select %p327, %s30, 0
        %s329 = scalar_select %p327, %s31, 0
        %p331 = scmp.eq.s32.totalorder %s30, 0
        %p332 = scmp.eq.s32.totalorder %s31, 0
        %p333 = pnand %p331, %p332
        %p334 = pneg %p333
        %p335 = scmp.eq.s32.totalorder %s30, 1
        %p336 = scmp.eq.s32.totalorder %s31, 3
        %p337 = pnand %p335, %p336
        %p338 = pneg %p337
        %v339 = vld [vmem:[%s295] sm:$0xff]
        %v340 = vlaneseq
        %v341 = vand.u32 %v340, 127
        %s342 = smul.u32 %s31, 128
        %v343 = vstv %s342
        %v344 = vadd.s32 %v343, %v341
        %vm345 = vcmp.lt.s32.totalorder %v344, 400
        %v346 = vsel %vm345, %v339, 0.0
        %v347 = vpack.c.bf16 %v346, %v346
        %p348 = scmp.eq.s32.totalorder %s29, 0
        // Predicated region
        $region53: #{resblock_forward.1} parent=47 // pred_check
          %p349 = pneg %p348
        $region54: #{resblock_forward.1} parent=47 // pred_check_branch
          %351 = sbr.rel (%p349) target = $region56
        $region55: #{resblock_forward.1} parent=47 // pred_region
          // Predicated region
          $region57: #{resblock_forward.1} parent=55 // pred_check
            _
          $region58: #{resblock_forward.1} parent=55 // pred_check_branch
            %353 = sbr.rel (%p333) target = $region60
          $region59: #{resblock_forward.1} parent=55 // pred_region
            %vm354 = vcmask 7168
            %355 = vst.msk [vmem:[#allocation2] sm:$0xff] %vm354, 0.0
            %356 = vst.msk [vmem:[#allocation3] sm:$0xff] %vm354, 0.0
          $region60: #{resblock_forward.1} parent=55 // pred_fallthru
            _
          %v357 = vld [vmem:[%s1] sm:$0xf]
          %vm358 = vcmask 64512
          %v360 = vsel %vm358, %v357, 0
          %vm362 = vcmask 1043456
          %v364 = vsel %vm362, %v347, 0
          %366 = vmatpush.bf16.msra.mxu0 0
          %367 = vmatpush.bf16.msra.mxu0 0
          %368 = vmatpush.bf16.msra.mxu0 0
          %369 = vmatpush.bf16.msra.mxu0 0
          %370 = vmatpush.bf16.msra.mxu0 0
          %371 = vmatpush.bf16.msra.mxu0 0
          %372 = vmatpush.bf16.msra.mxu0 0
          %373 = vmatpush.bf16.msra.mxu0 %v364
          %374 = vmatmul.bf16.gmra.mxu0 %v360
          %v375 = vpop.f32.mrf.mxu0
          %v376 = vadd.f32 0.0, %v375
          %v377 = vpop.f32.mrf.mxu0
          %378 = vdwg.mxu0
          %v379 = vld [vmem:[#allocation2] sm:$0xff]
          %380 = vadd.xlane.f32.xlu0 %v376
          %v381 = vpop.xlane.xlu0 %380
          %v382 = vadd.f32 %v379, %v381
          %vm383 = vcmask 7168
          %384 = vst.msk [vmem:[#allocation2] sm:$0xff] %vm383, %v382
          %v385 = vld [vmem:[#allocation3] sm:$0xff]
          %v386 = vmul.f32 %v376, %v376
          %387 = vadd.xlane.f32.xlu0 %v386
          %v388 = vpop.xlane.xlu0 %387
          %v389 = vadd.f32 %v385, %v388
          %390 = vst.msk [vmem:[#allocation3] sm:$0xff] %vm383, %v389
          // Predicated region
          $region61: #{resblock_forward.1} parent=55 // pred_check
            _
          $region62: #{resblock_forward.1} parent=55 // pred_check_branch
            %392 = sbr.rel (%p337) target = $region64
          $region63: #{resblock_forward.1} parent=55 // pred_region
            %v393 = vld [vmem:[#allocation2] sm:$0xff]
            %v394 = vmul.f32 %v393, 0.00125
            %v395 = vld [vmem:[#allocation3] sm:$0xff]
            %v396 = vmul.f32 %v395, 0.00125
            %v397 = vmul.f32 %v394, %v394
            %v398 = vsub.f32 %v396, %v397
            %v399 = vld [vmem:[%s3] sm:$0xff]
            %v400 = vadd.f32 %v398, 1e-05
            %v401 = vrsqrt.pop %v400
            %v402 = vmul.f32 %v401, %v400
            %v403 = vmul.f32 %v402, %v401
            %v404 = vmul.f32 0.5, %v403
            %v405 = vsub.f32 1.5, %v404
            %v406 = vmul.f32 %v401, %v405
            %vm407 = vweird.f32 %v400
            %vm408 = vweird.f32 %v401
            %vm409 = vmor %vm407, %vm408
            %v410 = vsel %vm409, %v401, %v406
            %v411 = vmul.f32 %v399, %v410
            %412 = vst.msk [vmem:[#allocation2] sm:$0xff] %vm383, %v411
            %v413 = vld [vmem:[%s4] sm:$0xff]
            %v414 = vmul.f32 %v394, %v411
            %v415 = vsub.f32 %v413, %v414
            %416 = vst.msk [vmem:[#allocation3] sm:$0xff] %vm383, %v415
          $region64: #{resblock_forward.1} parent=55 // pred_fallthru
            _
        $region56: #{resblock_forward.1} parent=47 // pred_fallthru
          _
        %p417 = scmp.eq.s32.totalorder %s29, 1
        // Predicated region
        $region65: #{resblock_forward.1} parent=47 // pred_check
          %p418 = pneg %p417
        $region66: #{resblock_forward.1} parent=47 // pred_check_branch
          %420 = sbr.rel (%p418) target = $region68
        $region67: #{resblock_forward.1} parent=47 // pred_region
          // Predicated region
          $region69: #{resblock_forward.1} parent=67 // pred_check
            _
          $region70: #{resblock_forward.1} parent=67 // pred_check_branch
            %422 = sbr.rel (%p333) target = $region72
          $region71: #{resblock_forward.1} parent=67 // pred_region
            %vm423 = vcmask 7168
            %424 = vst.msk [vmem:[#allocation4] sm:$0xff] %vm423, 0.0
            %425 = vst.msk [vmem:[#allocation5] sm:$0xff] %vm423, 0.0
          $region72: #{resblock_forward.1} parent=67 // pred_fallthru
            _
          %v426 = vld [vmem:[%s1] sm:$0xf]
          %vm427 = vcmask 64512
          %v429 = vsel %vm427, %v426, 0
          %vm431 = vcmask 1043456
          %v433 = vsel %vm431, %v347, 0
          %435 = vmatpush.bf16.msra.mxu0 0
          %436 = vmatpush.bf16.msra.mxu0 0
          %437 = vmatpush.bf16.msra.mxu0 0
          %438 = vmatpush.bf16.msra.mxu0 0
          %439 = vmatpush.bf16.msra.mxu0 0
          %440 = vmatpush.bf16.msra.mxu0 0
          %441 = vmatpush.bf16.msra.mxu0 0
          %442 = vmatpush.bf16.msra.mxu0 %v433
          %443 = vmatmul.bf16.gmra.mxu0 %v429
          %v444 = vpop.f32.mrf.mxu0
          %v445 = vadd.f32 0.0, %v444
          %v446 = vpop.f32.mrf.mxu0
          %447 = vdwg.mxu0
          %v448 = vld [vmem:[#allocation2] sm:$0xff]
          %450 = vset.pattern.permute.xlu0 0
          %451 = vperm.xlu0 %450, %v448
          %v452 = vpop.permute.xlu0 %451
          %v454 = vmul.f32 %v445, %v452
          %v455 = vld [vmem:[#allocation3] sm:$0xff]
          %457 = vset.pattern.permute.xlu0 0
          %458 = vperm.xlu0 %457, %v455
          %v459 = vpop.permute.xlu0 %458
          %v461 = vadd.f32 %v454, %v459
          %v462 = vmax.f32 %v461, 0.0
          %v463 = vld [vmem:[%s2] sm:$0xf]
          %v464 = vpack.c.bf16 %v462, %v462
          %v466 = vsel %vm427, %v463, 0
          %v469 = vsel %vm431, %v464, 0
          %471 = vmatpush.bf16.msra.mxu0 0
          %472 = vmatpush.bf16.msra.mxu0 0
          %473 = vmatpush.bf16.msra.mxu0 0
          %474 = vmatpush.bf16.msra.mxu0 0
          %475 = vmatpush.bf16.msra.mxu0 0
          %476 = vmatpush.bf16.msra.mxu0 0
          %477 = vmatpush.bf16.msra.mxu0 0
          %478 = vmatpush.bf16.msra.mxu0 %v469
          %479 = vmatmul.bf16.gmra.mxu0 %v466
          %v480 = vpop.f32.mrf.mxu0
          %v481 = vadd.f32 0.0, %v480
          %v482 = vpop.f32.mrf.mxu0
          %483 = vdwg.mxu0
          %v484 = vsel %vm345, %v481, 0.0
          %v485 = vld [vmem:[#allocation4] sm:$0xff]
          %486 = vadd.xlane.f32.xlu0 %v484
          %v487 = vpop.xlane.xlu0 %486
          %v488 = vadd.f32 %v485, %v487
          %vm489 = vcmask 7168
          %490 = vst.msk [vmem:[#allocation4] sm:$0xff] %vm489, %v488
          %v491 = vld [vmem:[#allocation5] sm:$0xff]
          %v492 = vmul.f32 %v484, %v484
          %493 = vadd.xlane.f32.xlu0 %v492
          %v494 = vpop.xlane.xlu0 %493
          %v495 = vadd.f32 %v491, %v494
          %496 = vst.msk [vmem:[#allocation5] sm:$0xff] %vm489, %v495
          // Predicated region
          $region73: #{resblock_forward.1} parent=67 // pred_check
            _
          $region74: #{resblock_forward.1} parent=67 // pred_check_branch
            %498 = sbr.rel (%p337) target = $region76
          $region75: #{resblock_forward.1} parent=67 // pred_region
            %v499 = vld [vmem:[#allocation4] sm:$0xff]
            %v500 = vmul.f32 %v499, 0.00125
            %v501 = vld [vmem:[#allocation5] sm:$0xff]
            %v502 = vmul.f32 %v501, 0.00125
            %v503 = vmul.f32 %v500, %v500
            %v504 = vsub.f32 %v502, %v503
            %v505 = vld [vmem:[%s5] sm:$0xff]
            %v506 = vadd.f32 %v504, 1e-05
            %v507 = vrsqrt.pop %v506
            %v508 = vmul.f32 %v507, %v506
            %v509 = vmul.f32 %v508, %v507
            %v510 = vmul.f32 0.5, %v509
            %v511 = vsub.f32 1.5, %v510
            %v512 = vmul.f32 %v507, %v511
            %vm513 = vweird.f32 %v506
            %vm514 = vweird.f32 %v507
            %vm515 = vmor %vm513, %vm514
            %v516 = vsel %vm515, %v507, %v512
            %v517 = vmul.f32 %v505, %v516
            %518 = vst.msk [vmem:[#allocation4] sm:$0xff] %vm489, %v517
            %v519 = vld [vmem:[%s6] sm:$0xff]
            %v520 = vmul.f32 %v500, %v517
            %v521 = vsub.f32 %v519, %v520
            %522 = vst.msk [vmem:[#allocation5] sm:$0xff] %vm489, %v521
          $region76: #{resblock_forward.1} parent=67 // pred_fallthru
            _
        $region68: #{resblock_forward.1} parent=47 // pred_fallthru
          _
        %p523 = scmp.eq.s32.totalorder %s29, 2
        // Predicated region
        $region77: #{resblock_forward.1} parent=47 // pred_check
          %p524 = pneg %p523
        $region78: #{resblock_forward.1} parent=47 // pred_check_branch
          %526 = sbr.rel (%p524) target = $region80
        $region79: #{resblock_forward.1} parent=47 // pred_region
          %v527 = vld [vmem:[%s1] sm:$0xf]
          %vm528 = vcmask 64512
          %v530 = vsel %vm528, %v527, 0
          %vm532 = vcmask 1043456
          %v534 = vsel %vm532, %v347, 0
          %536 = vmatpush.bf16.msra.mxu0 0
          %537 = vmatpush.bf16.msra.mxu0 0
          %538 = vmatpush.bf16.msra.mxu0 0
          %539 = vmatpush.bf16.msra.mxu0 0
          %540 = vmatpush.bf16.msra.mxu0 0
          %541 = vmatpush.bf16.msra.mxu0 0
          %542 = vmatpush.bf16.msra.mxu0 0
          %543 = vmatpush.bf16.msra.mxu0 %v534
          %544 = vmatmul.bf16.gmra.mxu0 %v530
          %v545 = vpop.f32.mrf.mxu0
          %v546 = vadd.f32 0.0, %v545
          %v547 = vpop.f32.mrf.mxu0
          %548 = vdwg.mxu0
          %v549 = vld [vmem:[#allocation2] sm:$0xff]
          %551 = vset.pattern.permute.xlu0 0
          %552 = vperm.xlu0 %551, %v549
          %v553 = vpop.permute.xlu0 %552
          %v555 = vmul.f32 %v546, %v553
          %v556 = vld [vmem:[#allocation3] sm:$0xff]
          %558 = vset.pattern.permute.xlu0 0
          %559 = vperm.xlu0 %558, %v556
          %v560 = vpop.permute.xlu0 %559
          %v562 = vadd.f32 %v555, %v560
          %v563 = vmax.f32 %v562, 0.0
          %v564 = vld [vmem:[%s2] sm:$0xf]
          %v565 = vpack.c.bf16 %v563, %v563
          %v567 = vsel %vm528, %v564, 0
          %v570 = vsel %vm532, %v565, 0
          %572 = vmatpush.bf16.msra.mxu0 0
          %573 = vmatpush.bf16.msra.mxu0 0
          %574 = vmatpush.bf16.msra.mxu0 0
          %575 = vmatpush.bf16.msra.mxu0 0
          %576 = vmatpush.bf16.msra.mxu0 0
          %577 = vmatpush.bf16.msra.mxu0 0
          %578 = vmatpush.bf16.msra.mxu0 0
          %579 = vmatpush.bf16.msra.mxu0 %v570
          %580 = vmatmul.bf16.gmra.mxu0 %v567
          %v581 = vpop.f32.mrf.mxu0
          %v582 = vadd.f32 0.0, %v581
          %v583 = vpop.f32.mrf.mxu0
          %584 = vdwg.mxu0
          %v585 = vld [vmem:[#allocation4] sm:$0xff]
          %587 = vset.pattern.permute.xlu0 0
          %588 = vperm.xlu0 %587, %v585
          %v589 = vpop.permute.xlu0 %588
          %v591 = vmul.f32 %v582, %v589
          %v592 = vld [vmem:[#allocation5] sm:$0xff]
          %594 = vset.pattern.permute.xlu0 0
          %595 = vperm.xlu0 %594, %v592
          %v596 = vpop.permute.xlu0 %595
          %v598 = vadd.f32 %v591, %v596
          %v599 = vadd.f32 %v598, %v346
          %600 = vst [vmem:[%s326] sm:$0xff] %v599
        $region80: #{resblock_forward.1} parent=47 // pred_fallthru
          _
        %s601 = sand.u32 %s213, 1
        %s602 = scalar_lea.sflag [#allocation8], %s601
        %s603 = sand.u32 %s213, 1
        %s604 = smul.addr %s603, 8
        %s605 = scalar_lea.vmem [#allocation9], %s604
        // Predicated region
        $region81: #{resblock_forward.1} parent=47 // pred_check
          %p606 = pneg %p223
        $region82: #{resblock_forward.1} parent=47 // pred_check_branch
          %608 = sbr.rel (%p606) target = $region84
        $region83: #{resblock_forward.1} parent=47 // pred_region
          %p609 = scmp.eq.s32.totalorder %s29, 2
          %s610 = scalar_select %p609, %s30, 0
          %s611 = scalar_select %p609, %s31, 0
          %613 = vsyncadd %s602, 0
          %s614 = smul.addr %s610, 4
          %s615 = sadd.s32 %s611, %s614
          %s616 = smul.addr %s615, 8
          %s617 = scalar_lea.hbm %s7, %s616
          %s619 = sshll.u32 %s605, 4
          %s620 = int_to_ptr.vmem [resolvable:$true] %s619
          %s621 = sshll.u32 %s617, 4
          %s622 = int_to_ptr.hbm [resolvable:$true] %s621
          %624 = dma.vmem_to_hbm [thread:$0]  %s620, 128, %s622, %s602
        $region84: #{resblock_forward.1} parent=47 // pred_fallthru
          _
      $region48: #{resblock_forward.1} parent=5 // pred_fallthru
        _
      %p625 = scmp.le.s32.totalorder 2, %s19
      // Predicated region
      $region85: #{resblock_forward.1} parent=5 // pred_check
        %p626 = pneg %p625
      $region86: #{resblock_forward.1} parent=5 // pred_check_branch
        %628 = sbr.rel (%p626) target = $region88
      $region87: #{resblock_forward.1} parent=5 // pred_region
        %s629 = ssub.s32 %s19, 2
        // Predicated region
        $region89: #{resblock_forward.1} parent=87 // pred_check
          %p630 = pneg %p229
        $region90: #{resblock_forward.1} parent=87 // pred_check_branch
          %632 = sbr.rel (%p630) target = $region92
        $region91: #{resblock_forward.1} parent=87 // pred_region
          %s633 = sand.u32 %s214, 1
          %s634 = scalar_lea.sflag [#allocation8], %s633
          %s635 = sand.u32 %s214, 1
          %s636 = smul.addr %s635, 8
          %s637 = scalar_lea.vmem [#allocation9], %s636
          %639 = dma.done %s634, 128
        $region92: #{resblock_forward.1} parent=87 // pred_fallthru
          _
      $region88: #{resblock_forward.1} parent=5 // pred_fallthru
        _
    $region6: #{resblock_forward.1} parent=1 // loop_footer
      %s23 = sadd.s32 1, %s19
    $region7: #{resblock_forward.1} parent=1 // loop_footer_branch
      %18 = sbr.rel target = $region3
    $region8: #{resblock_forward.1} parent=1 // loop_exit
      _
    %640 = vsyncpa [#allocation7], 1
    %s641 = scalar_lea.sflag [#allocation7], 1
    %642 = vsyncpa %s641, 1
    %643 = vsyncpa [#allocation8], 1
    %s644 = scalar_lea.sflag [#allocation8], 1
    %645 = vsyncpa %s644, 1

</llo_original>
